<compile_context>
chip_gen: v5e
topology: v5e:2x2
jax: 0.10.0
libtpu: 0.0.40
codegen_flags: <defaults>
</compile_context>

<pallas_src>
import jax
import jax.numpy as jnp
from jax.experimental import pallas as pl
from jax.experimental.pallas import tpu as pltpu

HIDDEN = 128
LANE = 128


def _round_up(x, m):
    return (x + m - 1) // m * m


# --------------------------------------------------------------------------
# Kernel: one batch tile per grid step; all parameters resident in VMEM.
# --------------------------------------------------------------------------
def _a2c_kernel(x_ref,
                w_sh_ref, b_sh_ref,     # (K_pad, 128), (1, 128)
                w_h_ref, b_h_ref,       # (128, 256),  (1, 256)   actor|critic hidden
                w_o_ref, b_o_ref,       # (256, 128),  (1, 128)   block-diag heads
                out_ref):               # (TB, 128)  lane-dense [actor | critic | 0-pad]
    compute_dtype = w_sh_ref.dtype

    x = x_ref[...]

    # shared = ReLU(x @ W_sh + b_sh)   -> (TB, 128), f32 accumulation
    shared = jnp.dot(x, w_sh_ref[...], preferred_element_type=jnp.float32)
    shared = jnp.maximum(shared + b_sh_ref[...], 0.0)

    # Fused actor/critic hidden layer: one (TB,128) @ (128,256) matmul.
    h = jnp.dot(shared.astype(compute_dtype), w_h_ref[...],
                preferred_element_type=jnp.float32)
    h = jnp.maximum(h + b_h_ref[...], 0.0)

    # Fused block-diagonal output layer: one (TB,256) @ (256,128) matmul.
    # Columns [0:action_dim] = actor logits, column [action_dim] = critic value.
    o = jnp.dot(h.astype(compute_dtype), w_o_ref[...],
                preferred_element_type=jnp.float32)
    out_ref[...] = (o + b_o_ref[...]).astype(out_ref.dtype)


# --------------------------------------------------------------------------
# Parameter packing (done once, outside the kernel).
# --------------------------------------------------------------------------
def pack_params(params, state_dim, action_dim, compute_dtype=jnp.float32):
    """Pack per-layer weights into the fused / padded layout the kernel uses."""
    k_pad = _round_up(state_dim, LANE)
    out_pad = LANE
    assert action_dim + 1 <= out_pad, "action_dim + 1 must fit in one 128-lane slab"

    # Zero-pad the contraction dim of the first layer (exact numerics).
    w_sh = jnp.zeros((k_pad, HIDDEN), jnp.float32).at[:state_dim, :].set(params["w_sh"])
    b_sh = params["b_sh"]

    # Fused hidden layer: [actor | critic] along the output axis.
    w_h = jnp.concatenate([params["w_a1"], params["w_c1"]], axis=1)   # (128, 256)
    b_h = jnp.concatenate([params["b_a1"], params["b_c1"]], axis=1)   # (1, 256)

    # Block-diagonal fused heads, zero-padded to a full 128-lane output slab.
    w_o = jnp.zeros((2 * HIDDEN, out_pad), jnp.float32)
    w_o = w_o.at[:HIDDEN, :action_dim].set(params["w_a2"])
    w_o = w_o.at[HIDDEN:, action_dim:action_dim + 1].set(params["w_c2"])
    b_o = jnp.zeros((1, out_pad), jnp.float32)
    b_o = b_o.at[:, :action_dim].set(params["b_a2"])
    b_o = b_o.at[:, action_dim:action_dim + 1].set(params["b_c2"])

    return {
        "w_sh": w_sh.astype(compute_dtype),
        "b_sh": b_sh.astype(jnp.float32),   # bias-add / ReLU stay f32 (v5e-friendly)
        "w_h":  w_h.astype(compute_dtype),
        "b_h":  b_h.astype(jnp.float32),
        "w_o":  w_o.astype(compute_dtype),
        "b_o":  b_o.astype(jnp.float32),
    }


# --------------------------------------------------------------------------
# Wrapper: batch grid, resident weights, lane-dense fused output.
# --------------------------------------------------------------------------
def a2c_forward(x, packed, action_dim, *, block_batch=None):
    """Forward pass. x: (batch, state_dim) f32. Returns (actor, critic)."""
    batch, state_dim = x.shape
    k_pad, hidden = packed["w_sh"].shape
    out_pad = packed["w_o"].shape[1]
    compute_dtype = packed["w_sh"].dtype

    # Batch tile: >=256 rows for v6e/v7x MXU when the batch is large, otherwise
    # the smallest sublane-aligned tile that covers the batch.
    if block_batch is None:
        block_batch = 256 if batch >= 256 else _round_up(batch, 8)
    padded_batch = _round_up(batch, block_batch)

    # Zero-pad batch rows and the contraction (state) dim — numerically exact.
    x_p = jnp.zeros((padded_batch, k_pad), compute_dtype)
    x_p = x_p.at[:batch, :state_dim].set(x.astype(compute_dtype))

    grid = (padded_batch // block_batch,)
    resident = lambda i: (0, 0)  # same block every step => weights stay in VMEM

    out = pl.pallas_call(
        _a2c_kernel,
        out_shape=jax.ShapeDtypeStruct((padded_batch, out_pad), jnp.float32),
        grid=grid,
        in_specs=[
            pl.BlockSpec((block_batch, k_pad), lambda i: (i, 0)),   # x: tiled over batch
            pl.BlockSpec((k_pad, hidden), resident),
            pl.BlockSpec((1, hidden), resident),
            pl.BlockSpec((hidden, 2 * hidden), resident),
            pl.BlockSpec((1, 2 * hidden), resident),
            pl.BlockSpec((2 * hidden, out_pad), resident),
            pl.BlockSpec((1, out_pad), resident),
        ],
        out_specs=pl.BlockSpec((block_batch, out_pad), lambda i: (i, 0)),
        compiler_params=pltpu.CompilerParams(
            dimension_semantics=("parallel",)),   # shards batch across v7x's 2 TCs
    )(
        x_p,
        packed["w_sh"], packed["b_sh"],
        packed["w_h"], packed["b_h"],
        packed["w_o"], packed["b_o"],
    )

    actor = out[:batch, :action_dim]
    critic = out[:batch, action_dim:action_dim + 1]
    return actor, critic


# --------------------------------------------------------------------------
# Synthetic params + pure-JAX reference (unfused layout, for correctness).
# --------------------------------------------------------------------------
def init_params(key, state_dim, action_dim):
    keys = jax.random.split(key, 10)

    def lin(kw, kb, fan_in, fan_out):
        bound = 1.0 / jnp.sqrt(fan_in)
        w = jax.random.uniform(kw, (fan_in, fan_out), jnp.float32, -bound, bound)
        b = jax.random.uniform(kb, (1, fan_out), jnp.float32, -bound, bound)
        return w, b

    w_sh, b_sh = lin(keys[0], keys[1], state_dim, HIDDEN)
    w_a1, b_a1 = lin(keys[2], keys[3], HIDDEN, HIDDEN)
    w_a2, b_a2 = lin(keys[4], keys[5], HIDDEN, action_dim)
    w_c1, b_c1 = lin(keys[6], keys[7], HIDDEN, HIDDEN)
    w_c2, b_c2 = lin(keys[8], keys[9], HIDDEN, 1)
    return dict(w_sh=w_sh, b_sh=b_sh,
                w_a1=w_a1, b_a1=b_a1, w_a2=w_a2, b_a2=b_a2,
                w_c1=w_c1, b_c1=b_c1, w_c2=w_c2, b_c2=b_c2)


def reference_forward(x, p):
    shared = jnp.maximum(x @ p["w_sh"] + p["b_sh"], 0.0)
    a = jnp.maximum(shared @ p["w_a1"] + p["b_a1"], 0.0) @ p["w_a2"] + p["b_a2"]
    c = jnp.maximum(shared @ p["w_c1"] + p["b_c1"], 0.0) @ p["w_c2"] + p["b_c2"]
    return a, c


if __name__ == "__main__":
    key = jax.random.PRNGKey(0)
    k_x, k_p = jax.random.split(key)

    # NOTE: at batch~8 this kernel is launch-overhead bound; the grid/tiling
    # pays off once many environment states are batched per call.
    batch, state_dim, action_dim = 8, 32, 8
    x = jax.random.normal(k_x, (batch, state_dim), jnp.float32)
    params = init_params(k_p, state_dim, action_dim)

    # f32 compute keeps the tight correctness check; pass compute_dtype=jnp.bfloat16
    # for v6e/v7x throughput (loosen tolerance to ~1e-2 in that case).
    packed = pack_params(params, state_dim, action_dim, compute_dtype=jnp.float32)

    actor, critic = jax.block_until_ready(a2c_forward(x, packed, action_dim))

    ref_actor, ref_critic = reference_forward(x, params)
    assert actor.shape == (batch, action_dim)
    assert critic.shape == (batch, 1)
    assert jnp.allclose(actor, ref_actor, atol=1e-4, rtol=1e-4)
    assert jnp.allclose(critic, ref_critic, atol=1e-4, rtol=1e-4)

    print("KERNEL_OK")
</pallas_src>

<mosaic_0001>
module attributes {stable_mosaic.version = 11 : i64} {
  func.func @_a2c_kernel(%arg0: i32, %arg1: memref<8x128xf32, #tpu.memory_space<vmem>>, %arg2: memref<128x128xf32, #tpu.memory_space<vmem>>, %arg3: memref<1x128xf32, #tpu.memory_space<vmem>>, %arg4: memref<128x256xf32, #tpu.memory_space<vmem>>, %arg5: memref<1x256xf32, #tpu.memory_space<vmem>>, %arg6: memref<256x128xf32, #tpu.memory_space<vmem>>, %arg7: memref<1x128xf32, #tpu.memory_space<vmem>>, %arg8: memref<8x128xf32, #tpu.memory_space<vmem>>) attributes {dimension_semantics = [#tpu.dimension_semantics<parallel>], iteration_bounds = array<i64: 1>, scalar_prefetch = 0 : i64, scratch_operands = 0 : i64, tpu.core_type = #tpu.core_type<tc>, window_params = [{transform_indices = @transform_0, window_bounds = array<i64: 8, 128>}, {pipeline_mode = #tpu.pipeline_mode<synchronous>, transform_indices = @transform_1, window_bounds = array<i64: 128, 128>}, {pipeline_mode = #tpu.pipeline_mode<synchronous>, transform_indices = @transform_2, window_bounds = array<i64: 1, 128>}, {pipeline_mode = #tpu.pipeline_mode<synchronous>, transform_indices = @transform_3, window_bounds = array<i64: 128, 256>}, {pipeline_mode = #tpu.pipeline_mode<synchronous>, transform_indices = @transform_4, window_bounds = array<i64: 1, 256>}, {pipeline_mode = #tpu.pipeline_mode<synchronous>, transform_indices = @transform_5, window_bounds = array<i64: 256, 128>}, {pipeline_mode = #tpu.pipeline_mode<synchronous>, transform_indices = @transform_6, window_bounds = array<i64: 1, 128>}, {transform_indices = @transform_7, window_bounds = array<i64: 8, 128>}]} {
    %c0 = arith.constant 0 : index
    %c0_0 = arith.constant 0 : index
    %0 = vector.load %arg1[%c0, %c0_0] : memref<8x128xf32, #tpu.memory_space<vmem>>, vector<8x128xf32>
    %c0_1 = arith.constant 0 : index
    %c0_2 = arith.constant 0 : index
    %1 = vector.load %arg2[%c0_1, %c0_2] : memref<128x128xf32, #tpu.memory_space<vmem>>, vector<128x128xf32>
    %cst = arith.constant dense<0.000000e+00> : vector<8x128xf32>
    %2 = tpu.matmul %0, %1, %cst {dimension_numbers = #tpu.dot_dimension_numbers<[1], [0], [0], [1], [0, 0, 1, 1], [], []>} : vector<8x128xf32>, vector<128x128xf32>, vector<8x128xf32> -> vector<8x128xf32>
    %c0_3 = arith.constant 0 : index
    %c0_4 = arith.constant 0 : index
    %3 = vector.load %arg3[%c0_3, %c0_4] : memref<1x128xf32, #tpu.memory_space<vmem>>, vector<1x128xf32>
    %4 = vector.broadcast %3 : vector<1x128xf32> to vector<8x128xf32>
    %5 = arith.addf %2, %4 : vector<8x128xf32>
    %cst_5 = arith.constant 0.000000e+00 : f32
    %6 = vector.broadcast %cst_5 : f32 to vector<8x128xf32>
    %7 = arith.maximumf %5, %6 : vector<8x128xf32>
    %c0_6 = arith.constant 0 : index
    %c0_7 = arith.constant 0 : index
    %8 = vector.load %arg4[%c0_6, %c0_7] : memref<128x256xf32, #tpu.memory_space<vmem>>, vector<128x256xf32>
    %cst_8 = arith.constant dense<0.000000e+00> : vector<8x256xf32>
    %9 = tpu.matmul %7, %8, %cst_8 {dimension_numbers = #tpu.dot_dimension_numbers<[1], [0], [0], [1], [0, 0, 1, 1], [], []>} : vector<8x128xf32>, vector<128x256xf32>, vector<8x256xf32> -> vector<8x256xf32>
    %c0_9 = arith.constant 0 : index
    %c0_10 = arith.constant 0 : index
    %10 = vector.load %arg5[%c0_9, %c0_10] : memref<1x256xf32, #tpu.memory_space<vmem>>, vector<1x256xf32>
    %11 = vector.broadcast %10 : vector<1x256xf32> to vector<8x256xf32>
    %12 = arith.addf %9, %11 : vector<8x256xf32>
    %cst_11 = arith.constant 0.000000e+00 : f32
    %13 = vector.broadcast %cst_11 : f32 to vector<8x256xf32>
    %14 = arith.maximumf %12, %13 : vector<8x256xf32>
    %c0_12 = arith.constant 0 : index
    %c0_13 = arith.constant 0 : index
    %15 = vector.load %arg6[%c0_12, %c0_13] : memref<256x128xf32, #tpu.memory_space<vmem>>, vector<256x128xf32>
    %cst_14 = arith.constant dense<0.000000e+00> : vector<8x128xf32>
    %16 = tpu.matmul %14, %15, %cst_14 {dimension_numbers = #tpu.dot_dimension_numbers<[1], [0], [0], [1], [0, 0, 1, 1], [], []>} : vector<8x256xf32>, vector<256x128xf32>, vector<8x128xf32> -> vector<8x128xf32>
    %c0_15 = arith.constant 0 : index
    %c0_16 = arith.constant 0 : index
    %17 = vector.load %arg7[%c0_15, %c0_16] : memref<1x128xf32, #tpu.memory_space<vmem>>, vector<1x128xf32>
    %18 = vector.broadcast %17 : vector<1x128xf32> to vector<8x128xf32>
    %19 = arith.addf %16, %18 : vector<8x128xf32>
    %c0_17 = arith.constant 0 : index
    %c0_18 = arith.constant 0 : index
    %20 = vector.load %arg8[%c0_17, %c0_18] : memref<8x128xf32, #tpu.memory_space<vmem>>, vector<8x128xf32>
    tpu.vector_store %arg8[%c0_17, %c0_18], %19 {strides = array<i32>} : memref<8x128xf32, #tpu.memory_space<vmem>>, vector<8x128xf32>,
    return
  }
  func.func @transform_0(%arg0: i32) -> (i32, i32) {
    %c0_i32 = arith.constant 0 : i32
    %c0_i32_0 = arith.constant 0 : i32
    return %arg0, %c0_i32 : i32, i32
  }
  func.func @transform_1(%arg0: i32) -> (i32, i32) {
    %c0_i32 = arith.constant 0 : i32
    %c0_i32_0 = arith.constant 0 : i32
    %c0_i32_1 = arith.constant 0 : i32
    return %c0_i32, %c0_i32_0 : i32, i32
  }
  func.func @transform_2(%arg0: i32) -> (i32, i32) {
    %c0_i32 = arith.constant 0 : i32
    %c0_i32_0 = arith.constant 0 : i32
    %c0_i32_1 = arith.constant 0 : i32
    return %c0_i32, %c0_i32_0 : i32, i32
  }
  func.func @transform_3(%arg0: i32) -> (i32, i32) {
    %c0_i32 = arith.constant 0 : i32
    %c0_i32_0 = arith.constant 0 : i32
    %c0_i32_1 = arith.constant 0 : i32
    return %c0_i32, %c0_i32_0 : i32, i32
  }
  func.func @transform_4(%arg0: i32) -> (i32, i32) {
    %c0_i32 = arith.constant 0 : i32
    %c0_i32_0 = arith.constant 0 : i32
    %c0_i32_1 = arith.constant 0 : i32
    return %c0_i32, %c0_i32_0 : i32, i32
  }
  func.func @transform_5(%arg0: i32) -> (i32, i32) {
    %c0_i32 = arith.constant 0 : i32
    %c0_i32_0 = arith.constant 0 : i32
    %c0_i32_1 = arith.constant 0 : i32
    return %c0_i32, %c0_i32_0 : i32, i32
  }
  func.func @transform_6(%arg0: i32) -> (i32, i32) {
    %c0_i32 = arith.constant 0 : i32
    %c0_i32_0 = arith.constant 0 : i32
    %c0_i32_1 = arith.constant 0 : i32
    return %c0_i32, %c0_i32_0 : i32, i32
  }
  func.func @transform_7(%arg0: i32) -> (i32, i32) {
    %c0_i32 = arith.constant 0 : i32
    %c0_i32_0 = arith.constant 0 : i32
    return %arg0, %c0_i32 : i32, i32
  }
}

</mosaic_0001>

<llo_original>
// kernel: tpu_custom_call.1
$region0: #{tpu_custom_call.1}
  #allocation0 [shape = 'u32[]', space=smem, size = 0x4, offset = 0x4, fixed_abs, tag = 'smem constant byte address 0x4 - core index']
  #allocation1 [shape = 'u32[72,128]{1,0:T(1,128)}', space=vmem, size = 0x9000, scoped, tag = 'internal scratch']
  %s0 = inlined_call_operand.hbm [shape: f32[8,128], index: 0, kind: input, shape index: {}]
  %s1 = inlined_call_operand.hbm [shape: f32[128,128], index: 1, kind: input, shape index: {}]
  %s2 = inlined_call_operand.vmem [shape: f32[1,128], index: 2, kind: input, shape index: {}]
  %s3 = inlined_call_operand.hbm [shape: f32[128,256], index: 3, kind: input, shape index: {}]
  %s4 = inlined_call_operand.vmem [shape: f32[1,256], index: 4, kind: input, shape index: {}]
  %s5 = inlined_call_operand.hbm [shape: f32[256,128], index: 5, kind: input, shape index: {}]
  %s6 = inlined_call_operand.vmem [shape: f32[1,128], index: 6, kind: input, shape index: {}]
  %s7 = inlined_call_operand.hbm [shape: f32[8,128], index: 7, kind: output, shape index: {}]
  %s8 = sld [smem:[#allocation0]]
  $region54: #{tpu_custom_call.1} parent=0
    _
  %s10 = ssub.s32 1, %s8
  %s11 = scalar_select 0, %s10, %s8
  $region1: #{tpu_custom_call.1} parent=0
    #allocation2 [shape = 'u8[4096]{0}', space=vmem, size = 0x1000, scoped, tag = 'input window, operand 0, single buffered']
    #allocation3 [shape = 's32[1]{0}', space=sflag, size = 0x4, scoped, tag = 'scoped memory for tpu_custom_call.1']
    #allocation4 [shape = 's32[1]{0}', space=sflag, size = 0x4, scoped, tag = 'scoped memory for tpu_custom_call.1']
    #allocation5 [shape = 'u8[65536]{0}', space=vmem, size = 0x10000, scoped, tag = 'input window, operand 1, single buffered']
    #allocation6 [shape = 's32[1]{0}', space=sflag, size = 0x4, scoped, tag = 'scoped memory for tpu_custom_call.1']
    #allocation7 [shape = 'u8[131072]{0}', space=vmem, size = 0x20000, scoped, tag = 'input window, operand 3, single buffered']
    #allocation8 [shape = 'u8[131072]{0}', space=vmem, size = 0x20000, scoped, tag = 'input window, operand 5, single buffered']
    #allocation9 [shape = 's32[1]{0}', space=sflag, size = 0x4, scoped, tag = 'scoped memory for tpu_custom_call.1']
    #allocation10 [shape = 'u8[4096]{0}', space=vmem, size = 0x1000, scoped, tag = 'output window, operand 0, single buffered']
    %12 = vsyncpa [#allocation3], 0
    %13 = vsyncpa [#allocation6], 0
    %14 = vsyncpa [#allocation9], 0
    %15 = vsyncpa [#allocation4], 0
    // Predicated region
    $region2: #{tpu_custom_call.1} parent=1 // pred_check
      _
    $region3: #{tpu_custom_call.1} parent=1 // pred_check_branch
      %17 = sbr.rel (0) target = $region5
    $region4: #{tpu_custom_call.1} parent=1 // pred_region
      %19 = vsyncadd [#allocation3], 0
      %s21 = sshll.u32 %s0, 4
      %s22 = int_to_ptr.hbm [resolvable:$true] %s21
      %s23 = sshll.u32 [#allocation2], 4
      %s24 = int_to_ptr.vmem [resolvable:$true] %s23
      %26 = dma.hbm_to_vmem [thread:$0]  %s22, 128, %s24, [#allocation3]
    $region5: #{tpu_custom_call.1} parent=1 // pred_fallthru
      _
    // Predicated region
    $region6: #{tpu_custom_call.1} parent=1 // pred_check
      _
    $region7: #{tpu_custom_call.1} parent=1 // pred_check_branch
      %28 = sbr.rel (0) target = $region9
    $region8: #{tpu_custom_call.1} parent=1 // pred_region
      %30 = vsyncadd [#allocation6], 0
      %s31 = sshll.u32 %s1, 4
      %s32 = int_to_ptr.hbm [resolvable:$true] %s31
      %s33 = sshll.u32 [#allocation5], 4
      %s34 = int_to_ptr.vmem [resolvable:$true] %s33
      %39 = dma.hbm_to_vmem [thread:$0]  %s32, 2048, %s34, [#allocation6], 128, 128, 8
    $region9: #{tpu_custom_call.1} parent=1 // pred_fallthru
      _
    // Predicated region
    $region10: #{tpu_custom_call.1} parent=1 // pred_check
      _
    $region11: #{tpu_custom_call.1} parent=1 // pred_check_branch
      %41 = sbr.rel (0) target = $region13
    $region12: #{tpu_custom_call.1} parent=1 // pred_region
      _
    $region13: #{tpu_custom_call.1} parent=1 // pred_fallthru
      _
    // Predicated region
    $region14: #{tpu_custom_call.1} parent=1 // pred_check
      _
    $region15: #{tpu_custom_call.1} parent=1 // pred_check_branch
      %43 = sbr.rel (0) target = $region17
    $region16: #{tpu_custom_call.1} parent=1 // pred_region
      %45 = vsyncadd [#allocation6], 0
      %s46 = sshll.u32 %s3, 4
      %s47 = int_to_ptr.hbm [resolvable:$true] %s46
      %s48 = sshll.u32 [#allocation7], 4
      %s49 = int_to_ptr.vmem [resolvable:$true] %s48
      %54 = dma.hbm_to_vmem [thread:$0]  %s47, 4096, %s49, [#allocation6], 256, 256, 16
    $region17: #{tpu_custom_call.1} parent=1 // pred_fallthru
      _
    // Predicated region
    $region18: #{tpu_custom_call.1} parent=1 // pred_check
      _
    $region19: #{tpu_custom_call.1} parent=1 // pred_check_branch
      %56 = sbr.rel (0) target = $region21
    $region20: #{tpu_custom_call.1} parent=1 // pred_region
      _
    $region21: #{tpu_custom_call.1} parent=1 // pred_fallthru
      _
    // Predicated region
    $region22: #{tpu_custom_call.1} parent=1 // pred_check
      _
    $region23: #{tpu_custom_call.1} parent=1 // pred_check_branch
      %58 = sbr.rel (0) target = $region25
    $region24: #{tpu_custom_call.1} parent=1 // pred_region
      %60 = vsyncadd [#allocation9], 0
      %s61 = sshll.u32 %s5, 4
      %s62 = int_to_ptr.hbm [resolvable:$true] %s61
      %s63 = sshll.u32 [#allocation8], 4
      %s64 = int_to_ptr.vmem [resolvable:$true] %s63
      %69 = dma.hbm_to_vmem [thread:$0]  %s62, 4096, %s64, [#allocation9], 128, 128, 8
    $region25: #{tpu_custom_call.1} parent=1 // pred_fallthru
      _
    // Predicated region
    $region26: #{tpu_custom_call.1} parent=1 // pred_check
      _
    $region27: #{tpu_custom_call.1} parent=1 // pred_check_branch
      %71 = sbr.rel (0) target = $region29
    $region28: #{tpu_custom_call.1} parent=1 // pred_region
      _
    $region29: #{tpu_custom_call.1} parent=1 // pred_fallthru
      _
    // Predicated region
    $region30: #{tpu_custom_call.1} parent=1 // pred_check
      _
    $region31: #{tpu_custom_call.1} parent=1 // pred_check_branch
      %73 = sbr.rel (0) target = $region33
    $region32: #{tpu_custom_call.1} parent=1 // pred_region
      %75 = dma.done [#allocation3], 128
    $region33: #{tpu_custom_call.1} parent=1 // pred_fallthru
      _
    // Predicated region
    $region34: #{tpu_custom_call.1} parent=1 // pred_check
      _
    $region35: #{tpu_custom_call.1} parent=1 // pred_check_branch
      %77 = sbr.rel (0) target = $region37
    $region36: #{tpu_custom_call.1} parent=1 // pred_region
      %79 = dma.done [#allocation6], 2048
    $region37: #{tpu_custom_call.1} parent=1 // pred_fallthru
      _
    // Predicated region
    $region38: #{tpu_custom_call.1} parent=1 // pred_check
      _
    $region39: #{tpu_custom_call.1} parent=1 // pred_check_branch
      %81 = sbr.rel (0) target = $region41
    $region40: #{tpu_custom_call.1} parent=1 // pred_region
      %83 = dma.done [#allocation6], 4096
    $region41: #{tpu_custom_call.1} parent=1 // pred_fallthru
      _
    // Predicated region
    $region42: #{tpu_custom_call.1} parent=1 // pred_check
      _
    $region43: #{tpu_custom_call.1} parent=1 // pred_check_branch
      %85 = sbr.rel (0) target = $region45
    $region44: #{tpu_custom_call.1} parent=1 // pred_region
      %87 = dma.done [#allocation9], 4096
    $region45: #{tpu_custom_call.1} parent=1 // pred_fallthru
      _
    %v88 = vld [vmem:[#allocation2] sm:$0xff]
    %v89 = vld [vmem:[#allocation5] sm:$0xff]
    %v90 = vld [vmem:[#allocation5 + $0x8] sm:$0xff]
    %v91 = vld [vmem:[#allocation5 + $0x10] sm:$0xff]
    %v92 = vld [vmem:[#allocation5 + $0x18] sm:$0xff]
    %v93 = vld [vmem:[#allocation5 + $0x20] sm:$0xff]
    %v94 = vld [vmem:[#allocation5 + $0x28] sm:$0xff]
    %v95 = vld [vmem:[#allocation5 + $0x30] sm:$0xff]
    %v96 = vld [vmem:[#allocation5 + $0x38] sm:$0xff]
    %v97 = vld [vmem:[#allocation5 + $0x40] sm:$0xff]
    %v98 = vld [vmem:[#allocation5 + $0x48] sm:$0xff]
    %v99 = vld [vmem:[#allocation5 + $0x50] sm:$0xff]
    %v100 = vld [vmem:[#allocation5 + $0x58] sm:$0xff]
    %v101 = vld [vmem:[#allocation5 + $0x60] sm:$0xff]
    %v102 = vld [vmem:[#allocation5 + $0x68] sm:$0xff]
    %v103 = vld [vmem:[#allocation5 + $0x70] sm:$0xff]
    %v104 = vld [vmem:[#allocation5 + $0x78] sm:$0xff]
    %v105 = vld [vmem:[%s2] sm:$0x1]
    %v107 = vperm.slane %v105, 0
    %109 = vmatpush.msra.mxu0 %v104
    %110 = vmatpush.msra.mxu0 %v103
    %111 = vmatpush.msra.mxu0 %v102
    %112 = vmatpush.msra.mxu0 %v101
    %113 = vmatpush.msra.mxu0 %v100
    %114 = vmatpush.msra.mxu0 %v99
    %115 = vmatpush.msra.mxu0 %v98
    %116 = vmatpush.msra.mxu0 %v97
    %117 = vmatpush.msra.mxu0 %v96
    %118 = vmatpush.msra.mxu0 %v95
    %119 = vmatpush.msra.mxu0 %v94
    %120 = vmatpush.msra.mxu0 %v93
    %121 = vmatpush.msra.mxu0 %v92
    %122 = vmatpush.msra.mxu0 %v91
    %123 = vmatpush.msra.mxu0 %v90
    %124 = vmatpush.msra.mxu0 %v89
    %125 = vmatmul.f32.gmra.mxu0 %v88
    %v126 = vpop.f32.mrf.mxu0
    %v127 = vadd.f32 %v107, %v126
    %128 = vdwg.mxu0
    %v129 = vmax.f32 %v127, 0.0
    %v130 = vld [vmem:[#allocation7] sm:$0xff]
    %v131 = vld [vmem:[#allocation7 + $0x8] sm:$0xff]
    %v132 = vld [vmem:[#allocation7 + $0x10] sm:$0xff]
    %v133 = vld [vmem:[#allocation7 + $0x18] sm:$0xff]
    %v134 = vld [vmem:[#allocation7 + $0x20] sm:$0xff]
    %v135 = vld [vmem:[#allocation7 + $0x28] sm:$0xff]
    %v136 = vld [vmem:[#allocation7 + $0x30] sm:$0xff]
    %v137 = vld [vmem:[#allocation7 + $0x38] sm:$0xff]
    %v138 = vld [vmem:[#allocation7 + $0x40] sm:$0xff]
    %v139 = vld [vmem:[#allocation7 + $0x48] sm:$0xff]
    %v140 = vld [vmem:[#allocation7 + $0x50] sm:$0xff]
    %v141 = vld [vmem:[#allocation7 + $0x58] sm:$0xff]
    %v142 = vld [vmem:[#allocation7 + $0x60] sm:$0xff]
    %v143 = vld [vmem:[#allocation7 + $0x68] sm:$0xff]
    %v144 = vld [vmem:[#allocation7 + $0x70] sm:$0xff]
    %v145 = vld [vmem:[#allocation7 + $0x78] sm:$0xff]
    %v146 = vld [vmem:[#allocation7 + $0x80] sm:$0xff]
    %v147 = vld [vmem:[#allocation7 + $0x88] sm:$0xff]
    %v148 = vld [vmem:[#allocation7 + $0x90] sm:$0xff]
    %v149 = vld [vmem:[#allocation7 + $0x98] sm:$0xff]
    %v150 = vld [vmem:[#allocation7 + $0xa0] sm:$0xff]
    %v151 = vld [vmem:[#allocation7 + $0xa8] sm:$0xff]
    %v152 = vld [vmem:[#allocation7 + $0xb0] sm:$0xff]
    %v153 = vld [vmem:[#allocation7 + $0xb8] sm:$0xff]
    %v154 = vld [vmem:[#allocation7 + $0xc0] sm:$0xff]
    %v155 = vld [vmem:[#allocation7 + $0xc8] sm:$0xff]
    %v156 = vld [vmem:[#allocation7 + $0xd0] sm:$0xff]
    %v157 = vld [vmem:[#allocation7 + $0xd8] sm:$0xff]
    %v158 = vld [vmem:[#allocation7 + $0xe0] sm:$0xff]
    %v159 = vld [vmem:[#allocation7 + $0xe8] sm:$0xff]
    %v160 = vld [vmem:[#allocation7 + $0xf0] sm:$0xff]
    %v161 = vld [vmem:[#allocation7 + $0xf8] sm:$0xff]
    %v162 = vld [vmem:[%s4] sm:$0x3]
    %v164 = vperm.slane %v162, 0
    %v165 = vperm.slane %v162, 1
    %168 = vmatpush.msra.mxu0 %v160
    %169 = vmatpush.msra.mxu0 %v158
    %170 = vmatpush.msra.mxu0 %v156
    %171 = vmatpush.msra.mxu0 %v154
    %172 = vmatpush.msra.mxu0 %v152
    %173 = vmatpush.msra.mxu0 %v150
    %174 = vmatpush.msra.mxu0 %v148
    %175 = vmatpush.msra.mxu0 %v146
    %176 = vmatpush.msra.mxu0 %v144
    %177 = vmatpush.msra.mxu0 %v142
    %178 = vmatpush.msra.mxu0 %v140
    %179 = vmatpush.msra.mxu0 %v138
    %180 = vmatpush.msra.mxu0 %v136
    %181 = vmatpush.msra.mxu0 %v134
    %182 = vmatpush.msra.mxu0 %v132
    %183 = vmatpush.msra.mxu0 %v130
    %184 = vmatmul.f32.gmra.mxu0 %v129
    %v185 = vpop.f32.mrf.mxu0
    %v186 = vadd.f32 %v164, %v185
    %187 = vdwg.mxu0
    %188 = vmatpush.msra.mxu0 %v161
    %189 = vmatpush.msra.mxu0 %v159
    %190 = vmatpush.msra.mxu0 %v157
    %191 = vmatpush.msra.mxu0 %v155
    %192 = vmatpush.msra.mxu0 %v153
    %193 = vmatpush.msra.mxu0 %v151
    %194 = vmatpush.msra.mxu0 %v149
    %195 = vmatpush.msra.mxu0 %v147
    %196 = vmatpush.msra.mxu0 %v145
    %197 = vmatpush.msra.mxu0 %v143
    %198 = vmatpush.msra.mxu0 %v141
    %199 = vmatpush.msra.mxu0 %v139
    %200 = vmatpush.msra.mxu0 %v137
    %201 = vmatpush.msra.mxu0 %v135
    %202 = vmatpush.msra.mxu0 %v133
    %203 = vmatpush.msra.mxu0 %v131
    %204 = vmatmul.f32.gmra.mxu0 %v129
    %v205 = vpop.f32.mrf.mxu0
    %v206 = vadd.f32 %v165, %v205
    %207 = vdwg.mxu0
    %v208 = vmax.f32 %v186, 0.0
    %v209 = vmax.f32 %v206, 0.0
    %v210 = vld [vmem:[#allocation8] sm:$0xff]
    %v211 = vld [vmem:[#allocation8 + $0x8] sm:$0xff]
    %v212 = vld [vmem:[#allocation8 + $0x10] sm:$0xff]
    %v213 = vld [vmem:[#allocation8 + $0x18] sm:$0xff]
    %v214 = vld [vmem:[#allocation8 + $0x20] sm:$0xff]
    %v215 = vld [vmem:[#allocation8 + $0x28] sm:$0xff]
    %v216 = vld [vmem:[#allocation8 + $0x30] sm:$0xff]
    %v217 = vld [vmem:[#allocation8 + $0x38] sm:$0xff]
    %v218 = vld [vmem:[#allocation8 + $0x40] sm:$0xff]
    %v219 = vld [vmem:[#allocation8 + $0x48] sm:$0xff]
    %v220 = vld [vmem:[#allocation8 + $0x50] sm:$0xff]
    %v221 = vld [vmem:[#allocation8 + $0x58] sm:$0xff]
    %v222 = vld [vmem:[#allocation8 + $0x60] sm:$0xff]
    %v223 = vld [vmem:[#allocation8 + $0x68] sm:$0xff]
    %v224 = vld [vmem:[#allocation8 + $0x70] sm:$0xff]
    %v225 = vld [vmem:[#allocation8 + $0x78] sm:$0xff]
    %v226 = vld [vmem:[#allocation8 + $0x80] sm:$0xff]
    %v227 = vld [vmem:[#allocation8 + $0x88] sm:$0xff]
    %v228 = vld [vmem:[#allocation8 + $0x90] sm:$0xff]
    %v229 = vld [vmem:[#allocation8 + $0x98] sm:$0xff]
    %v230 = vld [vmem:[#allocation8 + $0xa0] sm:$0xff]
    %v231 = vld [vmem:[#allocation8 + $0xa8] sm:$0xff]
    %v232 = vld [vmem:[#allocation8 + $0xb0] sm:$0xff]
    %v233 = vld [vmem:[#allocation8 + $0xb8] sm:$0xff]
    %v234 = vld [vmem:[#allocation8 + $0xc0] sm:$0xff]
    %v235 = vld [vmem:[#allocation8 + $0xc8] sm:$0xff]
    %v236 = vld [vmem:[#allocation8 + $0xd0] sm:$0xff]
    %v237 = vld [vmem:[#allocation8 + $0xd8] sm:$0xff]
    %v238 = vld [vmem:[#allocation8 + $0xe0] sm:$0xff]
    %v239 = vld [vmem:[#allocation8 + $0xe8] sm:$0xff]
    %v240 = vld [vmem:[#allocation8 + $0xf0] sm:$0xff]
    %v241 = vld [vmem:[#allocation8 + $0xf8] sm:$0xff]
    %v242 = vld [vmem:[%s6] sm:$0x1]
    %v244 = vperm.slane %v242, 0
    %246 = vmatpush.msra.mxu0 %v225
    %247 = vmatpush.msra.mxu0 %v224
    %248 = vmatpush.msra.mxu0 %v223
    %249 = vmatpush.msra.mxu0 %v222
    %250 = vmatpush.msra.mxu0 %v221
    %251 = vmatpush.msra.mxu0 %v220
    %252 = vmatpush.msra.mxu0 %v219
    %253 = vmatpush.msra.mxu0 %v218
    %254 = vmatpush.msra.mxu0 %v217
    %255 = vmatpush.msra.mxu0 %v216
    %256 = vmatpush.msra.mxu0 %v215
    %257 = vmatpush.msra.mxu0 %v214
    %258 = vmatpush.msra.mxu0 %v213
    %259 = vmatpush.msra.mxu0 %v212
    %260 = vmatpush.msra.mxu0 %v211
    %261 = vmatpush.msra.mxu0 %v210
    %262 = vmatmul.f32.gmra.mxu0 %v208
    %v263 = vpop.f32.mrf.mxu0
    %v264 = vadd.f32 %v244, %v263
    %265 = vdwg.mxu0
    %266 = vmatpush.msra.mxu0 %v241
    %267 = vmatpush.msra.mxu0 %v240
    %268 = vmatpush.msra.mxu0 %v239
    %269 = vmatpush.msra.mxu0 %v238
    %270 = vmatpush.msra.mxu0 %v237
    %271 = vmatpush.msra.mxu0 %v236
    %272 = vmatpush.msra.mxu0 %v235
    %273 = vmatpush.msra.mxu0 %v234
    %274 = vmatpush.msra.mxu0 %v233
    %275 = vmatpush.msra.mxu0 %v232
    %276 = vmatpush.msra.mxu0 %v231
    %277 = vmatpush.msra.mxu0 %v230
    %278 = vmatpush.msra.mxu0 %v229
    %279 = vmatpush.msra.mxu0 %v228
    %280 = vmatpush.msra.mxu0 %v227
    %281 = vmatpush.msra.mxu0 %v226
    %282 = vmatmul.f32.gmra.mxu0 %v209
    %v283 = vpop.f32.mrf.mxu0
    %v284 = vadd.f32 %v264, %v283
    %285 = vdwg.mxu0
    %286 = vst [vmem:[#allocation10] sm:$0xff] %v284
    // Predicated region
    $region46: #{tpu_custom_call.1} parent=1 // pred_check
      _
    $region47: #{tpu_custom_call.1} parent=1 // pred_check_branch
      %288 = sbr.rel (0) target = $region49
    $region48: #{tpu_custom_call.1} parent=1 // pred_region
      %290 = vsyncadd [#allocation4], 0
      %s292 = sshll.u32 [#allocation10], 4
      %s293 = int_to_ptr.vmem [resolvable:$true] %s292
      %s294 = sshll.u32 %s7, 4
      %s295 = int_to_ptr.hbm [resolvable:$true] %s294
      %297 = dma.vmem_to_hbm [thread:$0]  %s293, 128, %s295, [#allocation4]
    $region49: #{tpu_custom_call.1} parent=1 // pred_fallthru
      _
    // Predicated region
    $region50: #{tpu_custom_call.1} parent=1 // pred_check
      _
    $region51: #{tpu_custom_call.1} parent=1 // pred_check_branch
      %299 = sbr.rel (0) target = $region53
    $region52: #{tpu_custom_call.1} parent=1 // pred_region
      %301 = dma.done [#allocation4], 128
    $region53: #{tpu_custom_call.1} parent=1 // pred_fallthru
      _
    %302 = vsyncpa [#allocation3], 1
    %303 = vsyncpa [#allocation6], 1
    %304 = vsyncpa [#allocation9], 1
    %305 = vsyncpa [#allocation4], 1

</llo_original>
